<compile_context>
chip_gen: v6e
topology: v6e:2x2x1
jax: 0.10.0
libtpu: 0.0.40
codegen_flags: <defaults>
</compile_context>

<pallas_src>
import jax
import jax.numpy as jnp
from jax.experimental import pallas as pl
from jax.experimental.pallas import tpu as pltpu


# Above this many rows per block, the MXU path degenerates into thousands of
# M=1 matmul invocations whose fixed overheads no longer hide under the DMA.
_MXU_MAX_BLOCK_B = 256


def _seqpool_kernel_mxu(x_ref, w_ref, o_ref):
    """Both contractions on the MXU (flash-style batched einsums, q == 1)."""
    x = x_ref[...]                                   # (TB, TN, D), native dtype
    tb, _, d = x_ref.shape
    w = jnp.broadcast_to(w_ref[...], (tb, 1, d))     # (TB, 1, D), x.dtype

    # Attention logits, contracted over D on the MXU with f32 accumulation.
    s = jnp.einsum("bqd,bnd->bqn", w, x,
                   preferred_element_type=jnp.float32)        # (TB, 1, TN)

    # Softmax over the sequence axis (last axis), normalization deferred.
    m = jnp.max(s, axis=-1, keepdims=True)                    # (TB, 1, 1)
    e = jnp.exp(s - m)                                         # (TB, 1, TN)
    denom = jnp.sum(e, axis=-1, keepdims=True)                 # (TB, 1, 1)

    # Un-normalized weighted sum over N, also on the MXU.
    pooled = jnp.einsum("bqn,bnd->bqd", e.astype(x.dtype), x,
                        preferred_element_type=jnp.float32)    # (TB, 1, D)

    inv = pl.reciprocal(denom, approx=False)
    o_ref[...] = (pooled * inv).astype(o_ref.dtype)


def _seqpool_kernel_vpu(x_ref, w_ref, o_ref):
    """VPU/XLU path: exact f32 accumulation, no MXU (best for f32 inputs)."""
    x = x_ref[...]                                   # (TB, TN, D), native dtype
    w = w_ref[...]                                   # (1, 1, D), x.dtype

    # Lane-dense scores (TB, TN): multiply by the weight row, reduce over D.
    scores = jnp.sum(x * w, axis=-1).astype(jnp.float32)       # (TB, TN)

    m = jnp.max(scores, axis=-1, keepdims=True)                 # (TB, 1)
    e = jnp.exp(scores - m)                                     # (TB, TN) f32
    denom = jnp.sum(e, axis=-1, keepdims=True)                  # (TB, 1)

    # f32 weighted sum over N (promotion to f32 happens in the multiply).
    pooled = jnp.sum(e[:, :, None] * x, axis=1, keepdims=True)  # (TB, 1, D)

    inv = pl.reciprocal(denom, approx=False)[:, :, None]        # (TB, 1, 1)
    o_ref[...] = (pooled * inv).astype(o_ref.dtype)


def _round_up(a, m):
    return ((a + m - 1) // m) * m


def _vmem_limit_bytes():
    """Generation-aware VMEM limit: 3/4 of physical per-core VMEM, <=96 MiB."""
    try:
        phys = int(pltpu.get_tpu_info().vmem_capacity_bytes)
    except Exception:
        phys = 64 * 1024 * 1024          # v7x per-TensorCore size = safe floor
    limit = (phys // 4) * 3
    return max(32 * 1024 * 1024, min(limit, 96 * 1024 * 1024))


def _pick_block_b(B, row_bytes, target_block_bytes):
    """Batch rows per block: sized in bytes, multiple of 8, >=2 grid steps."""
    if B <= 8:
        return B                          # full-dim block (allowed for any B)
    tb = max(8, int(target_block_bytes // max(row_bytes, 1)))
    tb = (tb // 8) * 8
    # Keep >= 2 (ideally >= 4) grid steps so the BlockSpec pipeline overlaps
    # DMA with compute and v7x's two TensorCores both get work.
    if B >= 32:
        tb = min(tb, _round_up(pl.cdiv(B, 4), 8))
    else:
        tb = min(tb, _round_up(pl.cdiv(B, 2), 8))
    return max(8, min(tb, _round_up(B, 8)))


def seq_pool(x, w, b=None, *, block_b=None, use_mxu=None, vmem_limit_bytes=None):
    """SeqPool forward.

    x: (B, N, D) activations.
    w: (1, D)  = nn.Linear(hidden_dim, 1).weight (PyTorch layout).
    b: (1,)    = nn.Linear bias.  Accepted for API fidelity but unused:
                 softmax over the sequence axis is shift-invariant, so the
                 bias cannot change the output.
    Returns (B, D) in x.dtype.
    """
    del b  # mathematically a no-op under the softmax over N
    B, N, D = x.shape
    if vmem_limit_bytes is None:
        vmem_limit_bytes = _vmem_limit_bytes()

    itemsize = jnp.dtype(x.dtype).itemsize
    row_bytes = N * D * itemsize
    # ~1/5 of the VMEM limit per x block: 2 pipeline buffers + in-kernel
    # temporaries (f32 product slab on the VPU path) + headroom.
    target_block_bytes = min(32 * 1024 * 1024, vmem_limit_bytes // 5)
    if block_b is None:
        block_b = _pick_block_b(B, row_bytes, target_block_bytes)

    if 2 * block_b * row_bytes > (vmem_limit_bytes * 4) // 5:
        # TODO(synk): sequence-tiling (online-softmax over an N grid axis)
        # would handle this; not implemented in this revision.
        raise ValueError(
            f"SeqPool block ({block_b}, {N}, {D}) x{itemsize}B does not fit "
            f"double-buffered in the VMEM budget ({vmem_limit_bytes} B).")

    if use_mxu is None:
        # MXU pays off for sub-32-bit inputs (single-pass matmul, no f32
        # product slab).  f32 inputs keep the exact VPU reduction, which hides
        # comfortably under the (2x larger) f32 DMA on all generations.
        use_mxu = (itemsize < 4) and (block_b <= _MXU_MAX_BLOCK_B)
    kernel = _seqpool_kernel_mxu if use_mxu else _seqpool_kernel_vpu

    w_row = jnp.asarray(w).reshape(1, 1, D).astype(x.dtype)
    grid = (pl.cdiv(B, block_b),)

    out3 = pl.pallas_call(
        kernel,
        out_shape=jax.ShapeDtypeStruct((B, 1, D), x.dtype),
        grid_spec=pltpu.PrefetchScalarGridSpec(
            num_scalar_prefetch=0,
            grid=grid,
            in_specs=[
                pl.BlockSpec((block_b, N, D), lambda i: (i, 0, 0)),
                pl.BlockSpec((1, 1, D), lambda i: (0, 0, 0)),
            ],
            out_specs=pl.BlockSpec((block_b, 1, D), lambda i: (i, 0, 0)),
        ),
        compiler_params=pltpu.CompilerParams(
            dimension_semantics=("parallel",),
            vmem_limit_bytes=int(vmem_limit_bytes),
        ),
    )(x, w_row)
    return out3.reshape(B, D)


def seq_pool_ref(x, w, b):
    """Pure-JAX reference mirroring the PyTorch forward (bias included)."""
    scores = jnp.einsum("bnd,od->bno", x, w) + b[None, None, :]   # (B, N, 1)
    weights = jax.nn.softmax(scores, axis=1)                      # (B, N, 1)
    return jnp.sum(weights * x, axis=1)                           # (B, D)


if __name__ == "__main__":
    key = jax.random.PRNGKey(0)
    B, N, D = 2, 8, 32                      # batch=2, seq=8, hidden=32

    kx, kw, kb = jax.random.split(key, 3)
    x = jax.random.normal(kx, (B, N, D), dtype=jnp.float32)
    # nn.Linear(hidden_dim, 1): weight (1, D), bias (1,) — deterministic init.
    w_pt = jax.random.normal(kw, (1, D), dtype=jnp.float32) * 0.1
    b_pt = jax.random.normal(kb, (1,), dtype=jnp.float32) * 0.1

    ref = seq_pool_ref(x, w_pt, b_pt)

    # 1) f32 inputs -> exact VPU-reduction path, tight tolerance.
    out_f32 = jax.block_until_ready(seq_pool(x, w_pt, b_pt))
    assert out_f32.shape == (B, D), f"bad shape {out_f32.shape}"
    err_f32 = jnp.max(jnp.abs(out_f32 - ref))
    assert jnp.allclose(out_f32, ref, atol=1e-5, rtol=1e-5), (
        f"f32 mismatch: max abs err {err_f32}")

    # 2) bf16 inputs -> MXU (flash-style batched matmul) path, bf16 tolerance.
    out_bf16 = jax.block_until_ready(
        seq_pool(x.astype(jnp.bfloat16), w_pt, b_pt, use_mxu=True))
    assert out_bf16.shape == (B, D), f"bad shape {out_bf16.shape}"
    err_bf16 = jnp.max(jnp.abs(out_bf16.astype(jnp.float32) - ref))
    assert err_bf16 < 7.5e-2, f"bf16/MXU mismatch: max abs err {err_bf16}"

    print("KERNEL_OK")
</pallas_src>

<mosaic_0001>
module attributes {stable_mosaic.version = 11 : i64} {
  func.func @_seqpool_kernel_vpu(%arg0: i32, %arg1: memref<2x8x32xf32, #tpu.memory_space<vmem>>, %arg2: memref<1x1x32xf32, #tpu.memory_space<vmem>>, %arg3: memref<2x1x32xf32, #tpu.memory_space<vmem>>) attributes {dimension_semantics = [#tpu.dimension_semantics<parallel>], iteration_bounds = array<i64: 1>, scalar_prefetch = 0 : i64, scratch_operands = 0 : i64, tpu.core_type = #tpu.core_type<tc>, window_params = [{transform_indices = @transform_0, window_bounds = array<i64: 2, 8, 32>}, {pipeline_mode = #tpu.pipeline_mode<synchronous>, transform_indices = @transform_1, window_bounds = array<i64: 1, 1, 32>}, {transform_indices = @transform_2, window_bounds = array<i64: 2, 1, 32>}]} {
    %c0 = arith.constant 0 : index
    %c0_0 = arith.constant 0 : index
    %c0_1 = arith.constant 0 : index
    %0 = vector.load %arg1[%c0, %c0_0, %c0_1] : memref<2x8x32xf32, #tpu.memory_space<vmem>>, vector<2x8x32xf32>
    %c0_2 = arith.constant 0 : index
    %c0_3 = arith.constant 0 : index
    %c0_4 = arith.constant 0 : index
    %1 = vector.load %arg2[%c0_2, %c0_3, %c0_4] : memref<1x1x32xf32, #tpu.memory_space<vmem>>, vector<1x1x32xf32>
    %2 = vector.broadcast %1 : vector<1x1x32xf32> to vector<2x8x32xf32>
    %3 = arith.mulf %0, %2 : vector<2x8x32xf32>
    %cst = arith.constant dense<0.000000e+00> : vector<2x8xf32>
    %4 = vector.multi_reduction <add>, %3, %cst [2] : vector<2x8x32xf32> to vector<2x8xf32>
    %cst_5 = arith.constant dense<0xFF800000> : vector<2xf32>
    %5 = vector.multi_reduction <maximumf>, %4, %cst_5 [1] : vector<2x8xf32> to vector<2xf32>
    %6 = vector.shape_cast %5 : vector<2xf32> to vector<2x1xf32>
    %7 = vector.broadcast %6 : vector<2x1xf32> to vector<2x8xf32>
    %8 = arith.subf %4, %7 : vector<2x8xf32>
    %9 = math.exp %8 : vector<2x8xf32>
    %cst_6 = arith.constant dense<0.000000e+00> : vector<2xf32>
    %10 = vector.multi_reduction <add>, %9, %cst_6 [1] : vector<2x8xf32> to vector<2xf32>
    %11 = vector.shape_cast %10 : vector<2xf32> to vector<2x1xf32>
    %12 = vector.shape_cast %9 : vector<2x8xf32> to vector<2x8x1xf32>
    %13 = vector.broadcast %12 : vector<2x8x1xf32> to vector<2x8x32xf32>
    %14 = arith.mulf %13, %0 : vector<2x8x32xf32>
    %cst_7 = arith.constant dense<0.000000e+00> : vector<2x32xf32>
    %15 = vector.multi_reduction <add>, %14, %cst_7 [1] : vector<2x8x32xf32> to vector<2x32xf32>
    %16 = vector.shape_cast %15 : vector<2x32xf32> to vector<2x1x32xf32>
    %17 = tpu.reciprocal %11 : vector<2x1xf32> -> vector<2x1xf32>
    %18 = vector.shape_cast %17 : vector<2x1xf32> to vector<2x1x1xf32>
    %19 = vector.broadcast %18 : vector<2x1x1xf32> to vector<2x1x32xf32>
    %20 = arith.mulf %16, %19 : vector<2x1x32xf32>
    %c0_8 = arith.constant 0 : index
    %c0_9 = arith.constant 0 : index
    %c0_10 = arith.constant 0 : index
    %21 = vector.load %arg3[%c0_8, %c0_9, %c0_10] : memref<2x1x32xf32, #tpu.memory_space<vmem>>, vector<2x1x32xf32>
    tpu.vector_store %arg3[%c0_8, %c0_9, %c0_10], %20 {strides = array<i32>} : memref<2x1x32xf32, #tpu.memory_space<vmem>>, vector<2x1x32xf32>,
    return
  }
  func.func @transform_0(%arg0: i32) -> (i32, i32, i32) {
    %c0_i32 = arith.constant 0 : i32
    %c0_i32_0 = arith.constant 0 : i32
    %c0_i32_1 = arith.constant 0 : i32
    return %arg0, %c0_i32, %c0_i32_0 : i32, i32, i32
  }
  func.func @transform_1(%arg0: i32) -> (i32, i32, i32) {
    %c0_i32 = arith.constant 0 : i32
    %c0_i32_0 = arith.constant 0 : i32
    %c0_i32_1 = arith.constant 0 : i32
    %c0_i32_2 = arith.constant 0 : i32
    return %c0_i32, %c0_i32_0, %c0_i32_1 : i32, i32, i32
  }
  func.func @transform_2(%arg0: i32) -> (i32, i32, i32) {
    %c0_i32 = arith.constant 0 : i32
    %c0_i32_0 = arith.constant 0 : i32
    %c0_i32_1 = arith.constant 0 : i32
    return %arg0, %c0_i32, %c0_i32_0 : i32, i32, i32
  }
}

</mosaic_0001>

<llo_original>
// kernel: tpu_custom_call.1
$region0: #{tpu_custom_call.1}
  #allocation0 [shape = 'u32[]', space=smem, size = 0x4, offset = 0x4, fixed_abs, tag = 'smem constant byte address 0x4 - core index']
  #allocation1 [shape = 'u32[144,128]{1,0:T(1,128)}', space=vmem, size = 0x12000, scoped, tag = 'internal scratch']
  %s0 = inlined_call_operand.hbm [shape: f32[2,8,32], index: 0, kind: input, shape index: {}]
  %s1 = inlined_call_operand.vmem [shape: f32[1,1,32], index: 1, kind: input, shape index: {}]
  %s2 = inlined_call_operand.hbm [shape: f32[2,1,32], index: 2, kind: output, shape index: {}]
  %s3 = sld [smem:[#allocation0]]
  $region22: #{tpu_custom_call.1} parent=0
    _
  %s5 = ssub.s32 1, %s3
  %s6 = scalar_select 0, %s5, %s3
  $region1: #{tpu_custom_call.1} parent=0
    #allocation2 [shape = 'u8[8192]{0}', space=vmem, size = 0x2000, scoped, tag = 'input window, operand 0, single buffered']
    #allocation3 [shape = 's32[1]{0}', space=sflag, size = 0x4, scoped, tag = 'scoped memory for tpu_custom_call.1']
    #allocation4 [shape = 's32[1]{0}', space=sflag, size = 0x4, scoped, tag = 'scoped memory for tpu_custom_call.1']
    #allocation5 [shape = 'u8[1024]{0}', space=vmem, size = 0x400, scoped, tag = 'output window, operand 0, single buffered']
    %7 = vsyncpa [#allocation3], 0
    %8 = vsyncpa [#allocation4], 0
    // Predicated region
    $region2: #{tpu_custom_call.1} parent=1 // pred_check
      _
    $region3: #{tpu_custom_call.1} parent=1 // pred_check_branch
      %10 = sbr.rel (0) target = $region5
    $region4: #{tpu_custom_call.1} parent=1 // pred_region
      %s12 = ssub.s32 256, 256
      %13 = vsyncadd [#allocation3], %s12
      %s14 = sshll.u32 [#allocation2], 4
      %s15 = int_to_ptr.vmem [resolvable:$true] %s14
      %20 = dma.hbm_to_vmem [thread:$0]  %s0, 256, %s15, [#allocation3], 128, 128, 8
    $region5: #{tpu_custom_call.1} parent=1 // pred_fallthru
      _
    // Predicated region
    $region6: #{tpu_custom_call.1} parent=1 // pred_check
      _
    $region7: #{tpu_custom_call.1} parent=1 // pred_check_branch
      %22 = sbr.rel (0) target = $region9
    $region8: #{tpu_custom_call.1} parent=1 // pred_region
      _
    $region9: #{tpu_custom_call.1} parent=1 // pred_fallthru
      _
    // Predicated region
    $region10: #{tpu_custom_call.1} parent=1 // pred_check
      _
    $region11: #{tpu_custom_call.1} parent=1 // pred_check_branch
      %24 = sbr.rel (0) target = $region13
    $region12: #{tpu_custom_call.1} parent=1 // pred_region
      %25 = dma.done [#allocation3], 256
    $region13: #{tpu_custom_call.1} parent=1 // pred_fallthru
      _
    %v26 = vld [vmem:[#allocation2] sm:$0xff]
    %v27 = vld [vmem:[#allocation2 + $0x8] sm:$0xff]
    %v28 = vld [vmem:[%s1] sm:$0x1]
    %v30 = vlaneseq
    %v31 = vshrl.u32 %v30, 7
    %v32 = vsub.s32 0, %v31
    %v33 = vrot.slane %v28, %v32
    %v35 = vmul.f32 %v26, %v33
    %v36 = vmul.f32 %v27, %v33
    %vm37 = vcmask 261120
    %v38 = vsel %vm37, %v35, 0.0
    %39 = vadd.xlane.f32.xlu0 %v38
    %v40 = vpop.xlane.xlu0 %39
    %v41 = vsel %vm37, %v36, 0.0
    %42 = vadd.xlane.f32.xlu0 %v41
    %v43 = vpop.xlane.xlu0 %42
    %v46 = vlaneseq
    %v47 = vand.u32 %v46, 127
    %v48 = vlaneseq
    %v49 = vshrl.u32 %v48, 7
    %v50 = vsub.s32 %v47, %v49
    %v51 = vrot.slane %v40, %v50
    %v52 = vlaneseq
    %v53 = vshrl.u32 %v52, 7
    %v54 = vsub.s32 %v47, %v53
    %v55 = vrot.slane %v43, %v54
    %vm56 = vcmask 1041409
    %v57 = vsel %vm56, %v55, %v51
    %vm59 = vcmask 58368
    %v60 = vsel %vm59, %v57, -inf
    %61 = vmax.xlane.f32.xlu0 %v60
    %v62 = vpop.xlane.xlu0 %61
    %v64 = vlaneseq
    %v65 = vshrl.u32 %v64, 7
    %v66 = vsub.s32 0, %v65
    %v67 = vrot.slane %v62, %v66
    %v68 = vlaneseq
    %v69 = vshrl.u32 %v68, 7
    %v70 = vsub.s32 1, %v69
    %v71 = vrot.slane %v62, %v70
    %v74 = vsub.f32 %v40, %v67
    %v75 = vsub.f32 %v43, %v71
    %v76 = vmul.f32 %v74, 1.442695
    %v77 = vpow.pop %v76
    %v78 = vmul.f32 %v75, 1.442695
    %v79 = vpow.pop %v78
    %82 = vset.pattern.permute.xlu0 0
    %83 = vperm.xlu0 %82, %v77
    %v84 = vpop.permute.xlu0 %83
    %85 = vset.pattern.permute.xlu0 0
    %86 = vperm.xlu0 %85, %v79
    %v87 = vpop.permute.xlu0 %86
    %v88 = vlaneseq
    %v89 = vshrl.u32 %v88, 7
    %v90 = vsub.s32 %v47, %v89
    %v91 = vrot.slane %v84, %v90
    %v92 = vlaneseq
    %v93 = vshrl.u32 %v92, 7
    %v94 = vsub.s32 %v47, %v93
    %v95 = vrot.slane %v87, %v94
    %v96 = vsel %vm56, %v95, %v91
    %v98 = vsel %vm59, %v96, 0.0
    %99 = vadd.xlane.f32.xlu0 %v98
    %v100 = vpop.xlane.xlu0 %99
    %v103 = vmul.f32 %v84, %v26
    %v104 = vmul.f32 %v87, %v27
    %v105 = vsel %vm37, %v103, 0.0
    %v106 = vrot.slane %v105, 4
    %v107 = vadd.f32 %v105, %v106
    %v108 = vrot.slane %v107, 2
    %v109 = vadd.f32 %v107, %v108
    %v110 = vrot.slane %v109, 1
    %v111 = vadd.f32 %v109, %v110
    %v112 = vsel %vm37, %v104, 0.0
    %v113 = vrot.slane %v112, 4
    %v114 = vadd.f32 %v112, %v113
    %v115 = vrot.slane %v114, 2
    %v116 = vadd.f32 %v114, %v115
    %v117 = vrot.slane %v116, 1
    %v118 = vadd.f32 %v116, %v117
    %v119 = vrcp.pop %v100
    %v121 = vlaneseq
    %v122 = vshrl.u32 %v121, 7
    %v123 = vsub.s32 0, %v122
    %v124 = vrot.slane %v119, %v123
    %v125 = vlaneseq
    %v126 = vshrl.u32 %v125, 7
    %v127 = vsub.s32 1, %v126
    %v128 = vrot.slane %v119, %v127
    %v131 = vmul.f32 %v111, %v124
    %v132 = vmul.f32 %v118, %v128
    %vm133 = vcmask 253952
    %134 = vst.msk [vmem:[#allocation5] sm:$0x1] %vm133, %v131
    %135 = vst.msk [vmem:[#allocation5 + $0x1] sm:$0x1] %vm133, %v132
    // Predicated region
    $region14: #{tpu_custom_call.1} parent=1 // pred_check
      _
    $region15: #{tpu_custom_call.1} parent=1 // pred_check_branch
      %137 = sbr.rel (0) target = $region17
    $region16: #{tpu_custom_call.1} parent=1 // pred_region
      %s139 = ssub.s32 32, 32
      %140 = vsyncadd [#allocation4], %s139
      %s141 = sshll.u32 [#allocation5], 4
      %s142 = int_to_ptr.vmem [resolvable:$true] %s141
      %147 = dma.vmem_to_hbm [thread:$0]  %s142, 32, %s2, [#allocation4], 16, 16, 1
    $region17: #{tpu_custom_call.1} parent=1 // pred_fallthru
      _
    // Predicated region
    $region18: #{tpu_custom_call.1} parent=1 // pred_check
      _
    $region19: #{tpu_custom_call.1} parent=1 // pred_check_branch
      %149 = sbr.rel (0) target = $region21
    $region20: #{tpu_custom_call.1} parent=1 // pred_region
      %150 = dma.done [#allocation4], 32
    $region21: #{tpu_custom_call.1} parent=1 // pred_fallthru
      _
    %151 = vsyncpa [#allocation3], 1
    %152 = vsyncpa [#allocation4], 1

</llo_original>
